<compile_context>
chip_gen: v5e
topology: v5e:2x2
jax: 0.10.0
libtpu: 0.0.40
codegen_flags: <defaults>
</compile_context>

<pallas_src>
import functools

import jax
import jax.numpy as jnp
from jax.experimental import pallas as pl
from jax.experimental.pallas import tpu as pltpu


def _round_up(x, m):
    return (x + m - 1) // m * m


def _cdiv(a, b):
    return -(-a // b)


def _vmem_capacity_bytes():
    """Physical VMEM of the local TPU generation (conservative fallback)."""
    try:
        cap = int(pltpu.get_tpu_info().vmem_capacity_bytes)
        if cap > 0:
            return cap
    except Exception:
        pass
    return 64 << 20  # v7x-sized fallback: safe on every generation


def _pick_batch_fold(batch, cin):
    """Fold Bb batches onto the sublane axis so Bb*Cin reaches 8 sublanes."""
    if cin >= 8 or 8 % cin != 0:
        return 1
    bb = 8 // cin
    while bb > 1 and batch % bb != 0:
        bb //= 2
    return bb


def _pick_tile_hw(hw, b_folded, bb, cin_fold, cout, itemsize, vmem_cap,
                  max_tile=8192):
    """Largest pixel tile such that the double-buffered (padded) in+out blocks
    stay within ~35% of this generation's physical VMEM."""
    per_px = (_round_up(max(cin_fold, 8), 8)
              + bb * _round_up(cout, 128)) * itemsize
    block_budget = max(int(0.35 * vmem_cap), 2 << 20)
    t_cap = max(128, (block_budget // (2 * per_px)) // 128 * 128)
    tile = min(_round_up(hw, 128), max_tile, t_cap)
    # Split so both v7x TensorCores get a step -- but only when there is
    # enough work that the extra ~0.35 us/step overhead pays off.
    if b_folded * _cdiv(hw, tile) < 2 and hw >= 2048:
        tile = _round_up(max(_cdiv(hw, 2), 128), 128)
    if tile >= hw:
        tile = hw  # single full-extent tile: always a legal block dim
    return tile


def _vmem_limit_bytes(cin_fold, bb, cout, tile, itemsize, vmem_cap):
    """Double-buffered padded blocks + resident weight/bias + in-kernel
    temporaries, with headroom, capped at ~75% of physical VMEM."""
    x_blk = _round_up(cin_fold, 8) * _round_up(tile, 128) * itemsize
    o_blk = bb * _round_up(tile, 8) * _round_up(cout, 128) * itemsize
    w_blk = _round_up(cout, 8) * _round_up(cin_fold, 128) * itemsize
    b_blk = _round_up(cout, 8) * 128 * itemsize
    # f32 accumulator + transposed store temporary per folded batch.
    tmp = bb * (_round_up(cout, 8) + _round_up(cout, 128)) * _round_up(tile, 128) * 4
    need = 2 * (x_blk + o_blk) + 2 * (w_blk + b_blk) + tmp + (4 << 20)
    return int(min(max(need, 16 << 20), int(0.75 * vmem_cap)))


def _channel_mix_kernel(x_ref, w_ref, b_ref, o_ref, *, cin, bb, use_mxu):
    """One (folded-batch, pixel-tile) grid step.

    x_ref: (1, bb*cin, T)  input pixels, lane axis = pixels (lane-dense)
    w_ref: (Cout, cin)     resident weight
    b_ref: (Cout, 1)       resident bias column
    o_ref: (bb, T, Cout)   PyTorch output layout (transpose fused in-kernel)
    """
    w = w_ref[...]
    bias = b_ref[...].astype(jnp.float32)      # (Cout, 1)
    x_all = x_ref[0]                           # (bb*cin, T)

    if not use_mxu:
        xf = x_all.astype(jnp.float32)
        wf = w.astype(jnp.float32)

    for j in range(bb):                        # static unroll over folded batches
        base = j * cin
        if use_mxu:
            acc = jnp.dot(w, x_all[base:base + cin, :],
                          preferred_element_type=jnp.float32) + bias
        else:
            # Tiny-K path: Cin broadcast-FMAs on the VPU (outer products),
            # hidden under the DMA of this memory-bound kernel.
            acc = wf[:, 0:1] * xf[base:base + 1, :] + bias          # (Cout, T)
            for c in range(1, cin):
                acc = acc + wf[:, c:c + 1] * xf[base + c:base + c + 1, :]
        # Fused output transpose: XLU slot, free under DMA; stores land
        # contiguously in the (B, HW, Cout) HBM output (no second pass).
        o_ref[j] = acc.T.astype(o_ref.dtype)


def _pallas_channel_mix(x_in, w2d, bias_col, out_batch, hw, bb, tile_hw,
                        use_mxu, vmem_cap):
    """x_in: (B//bb, bb*Cin, HW) -> (B, HW, Cout) (PyTorch layout)."""
    b_folded, cin_fold, _ = x_in.shape
    cin = cin_fold // bb
    cout = w2d.shape[0]
    num_tiles = _cdiv(hw, tile_hw)
    itemsize = jnp.dtype(x_in.dtype).itemsize

    kernel = functools.partial(_channel_mix_kernel, cin=cin, bb=bb,
                               use_mxu=use_mxu)

    cost = pl.CostEstimate(
        flops=2 * out_batch * hw * cin * cout,
        transcendentals=0,
        bytes_accessed=(x_in.size + out_batch * hw * cout
                        + w2d.size + bias_col.size) * itemsize,
    )

    # NOTE: the constant-index weight/bias blocks could be single-buffered
    # (pipeline_mode=pl.Buffered(1)) to shave VMEM on v7x for very large
    # Cin*Cout; they are tiny here (<= 16 KiB), so default buffering is kept
    # for lowering safety.
    return pl.pallas_call(
        kernel,
        out_shape=jax.ShapeDtypeStruct((out_batch, hw, cout), x_in.dtype),
        grid_spec=pltpu.PrefetchScalarGridSpec(
            num_scalar_prefetch=0,
            grid=(b_folded, num_tiles),
            in_specs=[
                pl.BlockSpec((1, cin_fold, tile_hw), lambda b, t: (b, 0, t)),
                pl.BlockSpec((cout, cin), lambda b, t: (0, 0)),
                pl.BlockSpec((cout, 1), lambda b, t: (0, 0)),
            ],
            out_specs=pl.BlockSpec((bb, tile_hw, cout), lambda b, t: (b, t, 0)),
        ),
        compiler_params=pltpu.CompilerParams(
            dimension_semantics=("parallel", "parallel"),
            vmem_limit_bytes=_vmem_limit_bytes(
                cin_fold, bb, cout, tile_hw, itemsize, vmem_cap),
        ),
        cost_estimate=cost,
    )(x_in, w2d, bias_col)


def encoder_cell_content(features_map, weight, bias, *, conv=False, tile_hw=None):
    """Forward pass of EncoderCellContent.

    features_map: (B, C_in, H, W)  -- NCHW, like PyTorch.
    weight:
      conv=False: Linear weight (C_out, C_in) (PyTorch convention)
      conv=True : Conv2d 1x1 weight (C_out, C_in, 1, 1)
    bias: (C_out,)
    Returns: (B, H*W, C_out), matching the PyTorch module output.
    """
    B, Cin, H, W = features_map.shape
    w2d = weight.reshape(weight.shape[0], Cin) if conv else weight   # (Cout, Cin)
    Cout = w2d.shape[0]
    HW = H * W
    itemsize = jnp.dtype(features_map.dtype).itemsize

    vmem_cap = _vmem_capacity_bytes()
    # v7x-class chips (64 MiB VMEM, ~2x per-TC HBM BW): push the channel mix
    # onto the MXU earlier; elsewhere the VPU FMAs hide fully under the DMA.
    use_mxu = Cin > 16 or (vmem_cap <= (64 << 20) and Cin >= 8)

    bb = _pick_batch_fold(B, Cin)
    # Free reshape (regroups contiguous NCHW dims): pixels stay on the
    # 128-lane axis; bb batches fold into the sublane axis so the input block
    # is sublane-dense (e.g. 2 x Cin=4 -> exactly 8 sublanes, no padding).
    x_in = features_map.reshape(B // bb, bb * Cin, HW)
    bias_col = bias.reshape(Cout, 1)

    if tile_hw is None:
        tile_hw = _pick_tile_hw(HW, B // bb, bb, bb * Cin, Cout, itemsize,
                                vmem_cap)
    # TODO(synk): for ragged HW (not a 128 multiple) the edge tile carries
    # masked lanes (correct, slightly wasted bandwidth); a one-time wrapper
    # pad of HW would make every block lane-dense if that case matters.

    return _pallas_channel_mix(x_in, w2d, bias_col, B, HW, bb, tile_hw,
                               use_mxu, vmem_cap)


if __name__ == "__main__":
    # Small deterministic setup (matches the module's expected usage).
    B, Cin, H, W = 2, 4, 16, 16
    Cout = 32

    key = jax.random.PRNGKey(0)
    kx, kw, kb = jax.random.split(key, 3)

    features_map = jax.random.normal(kx, (B, Cin, H, W), dtype=jnp.float32)
    # PyTorch Linear-style init: uniform(-1/sqrt(Cin), 1/sqrt(Cin)).
    bound = 1.0 / (Cin ** 0.5)
    weight = jax.random.uniform(kw, (Cout, Cin), minval=-bound, maxval=bound,
                                dtype=jnp.float32)
    bias = jax.random.uniform(kb, (Cout,), minval=-bound, maxval=bound,
                              dtype=jnp.float32)

    # Pure-JAX reference (same semantics as the PyTorch forward).
    ref = jnp.einsum("bchw,oc->bhwo", features_map, weight) + bias
    ref = ref.reshape(B, H * W, Cout)

    # conv=False (Linear) mode -- the module default.
    out = encoder_cell_content(features_map, weight, bias, conv=False)
    out = jax.block_until_ready(out)
    assert out.shape == (B, H * W, Cout)
    assert jnp.allclose(out, ref, atol=1e-5, rtol=1e-5)

    # conv=True (1x1 Conv2d) mode shares the same kernel.
    weight_conv = weight.reshape(Cout, Cin, 1, 1)
    out_conv = encoder_cell_content(features_map, weight_conv, bias, conv=True)
    out_conv = jax.block_until_ready(out_conv)
    assert jnp.allclose(out_conv, ref, atol=1e-5, rtol=1e-5)

    print("KERNEL_OK")
</pallas_src>

<mosaic_0001>
module attributes {stable_mosaic.version = 11 : i64} {
  func.func @_channel_mix_kernel(%arg0: i32, %arg1: i32, %arg2: memref<1x8x256xf32, #tpu.memory_space<vmem>>, %arg3: memref<32x4xf32, #tpu.memory_space<vmem>>, %arg4: memref<32x1xf32, #tpu.memory_space<vmem>>, %arg5: memref<2x256x32xf32, #tpu.memory_space<vmem>>) attributes {dimension_semantics = [#tpu.dimension_semantics<parallel>, #tpu.dimension_semantics<parallel>], iteration_bounds = array<i64: 1, 1>, scalar_prefetch = 0 : i64, scratch_operands = 0 : i64, tpu.core_type = #tpu.core_type<tc>, window_params = [{transform_indices = @transform_0, window_bounds = array<i64: 1, 8, 256>}, {pipeline_mode = #tpu.pipeline_mode<synchronous>, transform_indices = @transform_1, window_bounds = array<i64: 32, 4>}, {pipeline_mode = #tpu.pipeline_mode<synchronous>, transform_indices = @transform_2, window_bounds = array<i64: 32, 1>}, {transform_indices = @transform_3, window_bounds = array<i64: 2, 256, 32>}]} {
    %c0 = arith.constant 0 : index
    %c0_0 = arith.constant 0 : index
    %0 = vector.load %arg3[%c0, %c0_0] : memref<32x4xf32, #tpu.memory_space<vmem>>, vector<32x4xf32>
    %c0_1 = arith.constant 0 : index
    %c0_2 = arith.constant 0 : index
    %1 = vector.load %arg4[%c0_1, %c0_2] : memref<32x1xf32, #tpu.memory_space<vmem>>, vector<32x1xf32>
    %c0_3 = arith.constant 0 : index
    %c0_4 = arith.constant 0 : index
    %c0_5 = arith.constant 0 : index
    %2 = vector.load %arg2[%c0_3, %c0_4, %c0_5] : memref<1x8x256xf32, #tpu.memory_space<vmem>>, vector<1x8x256xf32>
    %3 = vector.shape_cast %2 : vector<1x8x256xf32> to vector<8x256xf32>
    %4 = vector.extract_strided_slice %0 {offsets = [0, 0], sizes = [32, 1], strides = [1, 1]} : vector<32x4xf32> to vector<32x1xf32>
    %5 = vector.extract_strided_slice %3 {offsets = [0, 0], sizes = [1, 256], strides = [1, 1]} : vector<8x256xf32> to vector<1x256xf32>
    %6 = vector.broadcast %4 : vector<32x1xf32> to vector<32x256xf32>
    %7 = vector.broadcast %5 : vector<1x256xf32> to vector<32x256xf32>
    %8 = arith.mulf %6, %7 : vector<32x256xf32>
    %9 = vector.broadcast %1 : vector<32x1xf32> to vector<32x256xf32>
    %10 = arith.addf %8, %9 : vector<32x256xf32>
    %11 = vector.extract_strided_slice %0 {offsets = [0, 1], sizes = [32, 1], strides = [1, 1]} : vector<32x4xf32> to vector<32x1xf32>
    %12 = vector.extract_strided_slice %3 {offsets = [1, 0], sizes = [1, 256], strides = [1, 1]} : vector<8x256xf32> to vector<1x256xf32>
    %13 = vector.broadcast %11 : vector<32x1xf32> to vector<32x256xf32>
    %14 = vector.broadcast %12 : vector<1x256xf32> to vector<32x256xf32>
    %15 = arith.mulf %13, %14 : vector<32x256xf32>
    %16 = arith.addf %10, %15 : vector<32x256xf32>
    %17 = vector.extract_strided_slice %0 {offsets = [0, 2], sizes = [32, 1], strides = [1, 1]} : vector<32x4xf32> to vector<32x1xf32>
    %18 = vector.extract_strided_slice %3 {offsets = [2, 0], sizes = [1, 256], strides = [1, 1]} : vector<8x256xf32> to vector<1x256xf32>
    %19 = vector.broadcast %17 : vector<32x1xf32> to vector<32x256xf32>
    %20 = vector.broadcast %18 : vector<1x256xf32> to vector<32x256xf32>
    %21 = arith.mulf %19, %20 : vector<32x256xf32>
    %22 = arith.addf %16, %21 : vector<32x256xf32>
    %23 = vector.extract_strided_slice %0 {offsets = [0, 3], sizes = [32, 1], strides = [1, 1]} : vector<32x4xf32> to vector<32x1xf32>
    %24 = vector.extract_strided_slice %3 {offsets = [3, 0], sizes = [1, 256], strides = [1, 1]} : vector<8x256xf32> to vector<1x256xf32>
    %25 = vector.broadcast %23 : vector<32x1xf32> to vector<32x256xf32>
    %26 = vector.broadcast %24 : vector<1x256xf32> to vector<32x256xf32>
    %27 = arith.mulf %25, %26 : vector<32x256xf32>
    %28 = arith.addf %22, %27 : vector<32x256xf32>
    %29 = tpu.transpose %28, [1, 0] : vector<32x256xf32> -> vector<256x32xf32>
    %c0_6 = arith.constant 0 : index
    %c0_7 = arith.constant 0 : index
    %c0_8 = arith.constant 0 : index
    %30 = vector.load %arg5[%c0_6, %c0_7, %c0_8] : memref<2x256x32xf32, #tpu.memory_space<vmem>>, vector<1x256x32xf32>
    %31 = vector.shape_cast %30 : vector<1x256x32xf32> to vector<256x32xf32>
    %32 = vector.shape_cast %29 : vector<256x32xf32> to vector<1x256x32xf32>
    tpu.vector_store %arg5[%c0_6, %c0_7, %c0_8], %32 {strides = array<i32>} : memref<2x256x32xf32, #tpu.memory_space<vmem>>, vector<1x256x32xf32>,
    %33 = vector.extract_strided_slice %0 {offsets = [0, 0], sizes = [32, 1], strides = [1, 1]} : vector<32x4xf32> to vector<32x1xf32>
    %34 = vector.extract_strided_slice %3 {offsets = [4, 0], sizes = [1, 256], strides = [1, 1]} : vector<8x256xf32> to vector<1x256xf32>
    %35 = vector.broadcast %33 : vector<32x1xf32> to vector<32x256xf32>
    %36 = vector.broadcast %34 : vector<1x256xf32> to vector<32x256xf32>
    %37 = arith.mulf %35, %36 : vector<32x256xf32>
    %38 = vector.broadcast %1 : vector<32x1xf32> to vector<32x256xf32>
    %39 = arith.addf %37, %38 : vector<32x256xf32>
    %40 = vector.extract_strided_slice %0 {offsets = [0, 1], sizes = [32, 1], strides = [1, 1]} : vector<32x4xf32> to vector<32x1xf32>
    %41 = vector.extract_strided_slice %3 {offsets = [5, 0], sizes = [1, 256], strides = [1, 1]} : vector<8x256xf32> to vector<1x256xf32>
    %42 = vector.broadcast %40 : vector<32x1xf32> to vector<32x256xf32>
    %43 = vector.broadcast %41 : vector<1x256xf32> to vector<32x256xf32>
    %44 = arith.mulf %42, %43 : vector<32x256xf32>
    %45 = arith.addf %39, %44 : vector<32x256xf32>
    %46 = vector.extract_strided_slice %0 {offsets = [0, 2], sizes = [32, 1], strides = [1, 1]} : vector<32x4xf32> to vector<32x1xf32>
    %47 = vector.extract_strided_slice %3 {offsets = [6, 0], sizes = [1, 256], strides = [1, 1]} : vector<8x256xf32> to vector<1x256xf32>
    %48 = vector.broadcast %46 : vector<32x1xf32> to vector<32x256xf32>
    %49 = vector.broadcast %47 : vector<1x256xf32> to vector<32x256xf32>
    %50 = arith.mulf %48, %49 : vector<32x256xf32>
    %51 = arith.addf %45, %50 : vector<32x256xf32>
    %52 = vector.extract_strided_slice %0 {offsets = [0, 3], sizes = [32, 1], strides = [1, 1]} : vector<32x4xf32> to vector<32x1xf32>
    %53 = vector.extract_strided_slice %3 {offsets = [7, 0], sizes = [1, 256], strides = [1, 1]} : vector<8x256xf32> to vector<1x256xf32>
    %54 = vector.broadcast %52 : vector<32x1xf32> to vector<32x256xf32>
    %55 = vector.broadcast %53 : vector<1x256xf32> to vector<32x256xf32>
    %56 = arith.mulf %54, %55 : vector<32x256xf32>
    %57 = arith.addf %51, %56 : vector<32x256xf32>
    %58 = tpu.transpose %57, [1, 0] : vector<32x256xf32> -> vector<256x32xf32>
    %c1 = arith.constant 1 : index
    %c0_9 = arith.constant 0 : index
    %c0_10 = arith.constant 0 : index
    %59 = vector.load %arg5[%c1, %c0_9, %c0_10] : memref<2x256x32xf32, #tpu.memory_space<vmem>>, vector<1x256x32xf32>
    %60 = vector.shape_cast %59 : vector<1x256x32xf32> to vector<256x32xf32>
    %61 = vector.shape_cast %58 : vector<256x32xf32> to vector<1x256x32xf32>
    tpu.vector_store %arg5[%c1, %c0_9, %c0_10], %61 {strides = array<i32>} : memref<2x256x32xf32, #tpu.memory_space<vmem>>, vector<1x256x32xf32>,
    return
  }
  func.func @transform_0(%arg0: i32, %arg1: i32) -> (i32, i32, i32) {
    %c0_i32 = arith.constant 0 : i32
    %c0_i32_0 = arith.constant 0 : i32
    return %arg0, %c0_i32, %arg1 : i32, i32, i32
  }
  func.func @transform_1(%arg0: i32, %arg1: i32) -> (i32, i32) {
    %c0_i32 = arith.constant 0 : i32
    %c0_i32_0 = arith.constant 0 : i32
    %c0_i32_1 = arith.constant 0 : i32
    return %c0_i32, %c0_i32_0 : i32, i32
  }
  func.func @transform_2(%arg0: i32, %arg1: i32) -> (i32, i32) {
    %c0_i32 = arith.constant 0 : i32
    %c0_i32_0 = arith.constant 0 : i32
    %c0_i32_1 = arith.constant 0 : i32
    return %c0_i32, %c0_i32_0 : i32, i32
  }
  func.func @transform_3(%arg0: i32, %arg1: i32) -> (i32, i32, i32) {
    %c0_i32 = arith.constant 0 : i32
    %c0_i32_0 = arith.constant 0 : i32
    return %arg0, %arg1, %c0_i32 : i32, i32, i32
  }
}

</mosaic_0001>

<llo_original>
// kernel: tpu_custom_call.1
$region0: #{tpu_custom_call.1}
  #allocation0 [shape = 'u32[]', space=smem, size = 0x4, offset = 0x4, fixed_abs, tag = 'smem constant byte address 0x4 - core index']
  #allocation1 [shape = 'u32[72,128]{1,0:T(1,128)}', space=vmem, size = 0x9000, scoped, tag = 'internal scratch']
  %s0 = inlined_call_operand.vmem [shape: f32[1,8,256], index: 0, kind: input, shape index: {}]
  %s1 = inlined_call_operand.vmem [shape: f32[32,4], index: 1, kind: input, shape index: {}]
  %s2 = inlined_call_operand.vmem [shape: f32[32,1], index: 2, kind: input, shape index: {}]
  %s3 = inlined_call_operand.vmem [shape: f32[2,256,32], index: 3, kind: output, shape index: {}]
  %s4 = sld [smem:[#allocation0]]
  $region22: #{tpu_custom_call.1} parent=0
    _
  %s6 = ssub.s32 1, %s4
  %s7 = scalar_select 0, %s6, %s4
  // Predicated region
  $region2: #{tpu_custom_call.1} parent=0 // pred_check
    _
  $region3: #{tpu_custom_call.1} parent=0 // pred_check_branch
    %9 = sbr.rel (0) target = $region5
  $region4: #{tpu_custom_call.1} parent=0 // pred_region
    _
  $region5: #{tpu_custom_call.1} parent=0 // pred_fallthru
    _
  // Predicated region
  $region6: #{tpu_custom_call.1} parent=0 // pred_check
    _
  $region7: #{tpu_custom_call.1} parent=0 // pred_check_branch
    %11 = sbr.rel (0) target = $region9
  $region8: #{tpu_custom_call.1} parent=0 // pred_region
    _
  $region9: #{tpu_custom_call.1} parent=0 // pred_fallthru
    _
  // Predicated region
  $region10: #{tpu_custom_call.1} parent=0 // pred_check
    _
  $region11: #{tpu_custom_call.1} parent=0 // pred_check_branch
    %13 = sbr.rel (0) target = $region13
  $region12: #{tpu_custom_call.1} parent=0 // pred_region
    _
  $region13: #{tpu_custom_call.1} parent=0 // pred_fallthru
    _
  %v14 = vld [vmem:[%s1] sm:$0xff]
  %v15 = vld [vmem:[%s1 + $0x8] sm:$0xff]
  %v16 = vld [vmem:[%s1 + $0x10] sm:$0xff]
  %v17 = vld [vmem:[%s1 + $0x18] sm:$0xff]
  %v18 = vld [vmem:[%s2] sm:$0xff]
  %v19 = vld [vmem:[%s2 + $0x8] sm:$0xff]
  %v20 = vld [vmem:[%s2 + $0x10] sm:$0xff]
  %v21 = vld [vmem:[%s2 + $0x18] sm:$0xff]
  %v22 = vld [vmem:[%s0] sm:$0xff]
  %v23 = vld [vmem:[%s0 + $0x8] sm:$0xff]
  %25 = vset.pattern.permute.xlu0 0
  %26 = vperm.xlu0 %25, %v14
  %v27 = vpop.permute.xlu0 %26
  %30 = vset.pattern.permute.xlu0 0
  %31 = vperm.xlu0 %30, %v15
  %v32 = vpop.permute.xlu0 %31
  %35 = vset.pattern.permute.xlu0 0
  %36 = vperm.xlu0 %35, %v16
  %v37 = vpop.permute.xlu0 %36
  %40 = vset.pattern.permute.xlu0 0
  %41 = vperm.xlu0 %40, %v17
  %v42 = vpop.permute.xlu0 %41
  %v44 = vperm.slane %v22, 0
  %v45 = vperm.slane %v23, 0
  %v46 = vmul.f32 %v27, %v44
  %v47 = vmul.f32 %v27, %v45
  %v48 = vmul.f32 %v32, %v44
  %v49 = vmul.f32 %v32, %v45
  %v50 = vmul.f32 %v37, %v44
  %v51 = vmul.f32 %v37, %v45
  %v52 = vmul.f32 %v42, %v44
  %v53 = vmul.f32 %v42, %v45
  %55 = vset.pattern.permute.xlu0 0
  %56 = vperm.xlu0 %55, %v18
  %v57 = vpop.permute.xlu0 %56
  %60 = vset.pattern.permute.xlu0 0
  %61 = vperm.xlu0 %60, %v19
  %v62 = vpop.permute.xlu0 %61
  %65 = vset.pattern.permute.xlu0 0
  %66 = vperm.xlu0 %65, %v20
  %v67 = vpop.permute.xlu0 %66
  %70 = vset.pattern.permute.xlu0 0
  %71 = vperm.xlu0 %70, %v21
  %v72 = vpop.permute.xlu0 %71
  %v74 = vadd.f32 %v46, %v57
  %v75 = vadd.f32 %v47, %v57
  %v76 = vadd.f32 %v48, %v62
  %v77 = vadd.f32 %v49, %v62
  %v78 = vadd.f32 %v50, %v67
  %v79 = vadd.f32 %v51, %v67
  %v80 = vadd.f32 %v52, %v72
  %v81 = vadd.f32 %v53, %v72
  %82 = vset.pattern.permute.xlu0 1
  %83 = vperm.xlu0 %82, %v14
  %v84 = vpop.permute.xlu0 %83
  %86 = vset.pattern.permute.xlu0 1
  %87 = vperm.xlu0 %86, %v15
  %v88 = vpop.permute.xlu0 %87
  %90 = vset.pattern.permute.xlu0 1
  %91 = vperm.xlu0 %90, %v16
  %v92 = vpop.permute.xlu0 %91
  %94 = vset.pattern.permute.xlu0 1
  %95 = vperm.xlu0 %94, %v17
  %v96 = vpop.permute.xlu0 %95
  %v98 = vperm.slane %v22, 1
  %v99 = vperm.slane %v23, 1
  %v100 = vmul.f32 %v84, %v98
  %v101 = vmul.f32 %v84, %v99
  %v102 = vmul.f32 %v88, %v98
  %v103 = vmul.f32 %v88, %v99
  %v104 = vmul.f32 %v92, %v98
  %v105 = vmul.f32 %v92, %v99
  %v106 = vmul.f32 %v96, %v98
  %v107 = vmul.f32 %v96, %v99
  %v108 = vadd.f32 %v74, %v100
  %v109 = vadd.f32 %v75, %v101
  %v110 = vadd.f32 %v76, %v102
  %v111 = vadd.f32 %v77, %v103
  %v112 = vadd.f32 %v78, %v104
  %v113 = vadd.f32 %v79, %v105
  %v114 = vadd.f32 %v80, %v106
  %v115 = vadd.f32 %v81, %v107
  %116 = vset.pattern.permute.xlu0 2
  %117 = vperm.xlu0 %116, %v14
  %v118 = vpop.permute.xlu0 %117
  %120 = vset.pattern.permute.xlu0 2
  %121 = vperm.xlu0 %120, %v15
  %v122 = vpop.permute.xlu0 %121
  %124 = vset.pattern.permute.xlu0 2
  %125 = vperm.xlu0 %124, %v16
  %v126 = vpop.permute.xlu0 %125
  %128 = vset.pattern.permute.xlu0 2
  %129 = vperm.xlu0 %128, %v17
  %v130 = vpop.permute.xlu0 %129
  %v132 = vperm.slane %v22, 2
  %v133 = vperm.slane %v23, 2
  %v134 = vmul.f32 %v118, %v132
  %v135 = vmul.f32 %v118, %v133
  %v136 = vmul.f32 %v122, %v132
  %v137 = vmul.f32 %v122, %v133
  %v138 = vmul.f32 %v126, %v132
  %v139 = vmul.f32 %v126, %v133
  %v140 = vmul.f32 %v130, %v132
  %v141 = vmul.f32 %v130, %v133
  %v142 = vadd.f32 %v108, %v134
  %v143 = vadd.f32 %v109, %v135
  %v144 = vadd.f32 %v110, %v136
  %v145 = vadd.f32 %v111, %v137
  %v146 = vadd.f32 %v112, %v138
  %v147 = vadd.f32 %v113, %v139
  %v148 = vadd.f32 %v114, %v140
  %v149 = vadd.f32 %v115, %v141
  %150 = vset.pattern.permute.xlu0 3
  %151 = vperm.xlu0 %150, %v14
  %v152 = vpop.permute.xlu0 %151
  %154 = vset.pattern.permute.xlu0 3
  %155 = vperm.xlu0 %154, %v15
  %v156 = vpop.permute.xlu0 %155
  %158 = vset.pattern.permute.xlu0 3
  %159 = vperm.xlu0 %158, %v16
  %v160 = vpop.permute.xlu0 %159
  %162 = vset.pattern.permute.xlu0 3
  %163 = vperm.xlu0 %162, %v17
  %v164 = vpop.permute.xlu0 %163
  %v166 = vperm.slane %v22, 3
  %v167 = vperm.slane %v23, 3
  %v168 = vmul.f32 %v152, %v166
  %v169 = vmul.f32 %v152, %v167
  %v170 = vmul.f32 %v156, %v166
  %v171 = vmul.f32 %v156, %v167
  %v172 = vmul.f32 %v160, %v166
  %v173 = vmul.f32 %v160, %v167
  %v174 = vmul.f32 %v164, %v166
  %v175 = vmul.f32 %v164, %v167
  %v176 = vadd.f32 %v142, %v168
  %v177 = vadd.f32 %v143, %v169
  %v178 = vadd.f32 %v144, %v170
  %v179 = vadd.f32 %v145, %v171
  %v180 = vadd.f32 %v146, %v172
  %v181 = vadd.f32 %v147, %v173
  %v182 = vadd.f32 %v148, %v174
  %v183 = vadd.f32 %v149, %v175
  %184 = vxpose.xlu0.b32.start [1/16] %v176, 128
  %185 = vxpose.xlu0.b32.cont [2/16] %v178, 128
  %186 = vxpose.xlu0.b32.cont [3/16] %v180, 128
  %187 = vxpose.xlu0.b32.cont [4/16] %v182, 128
  %188 = vxpose.xlu0.b32.cont [5/16] 0.0, 128
  %189 = vxpose.xlu0.b32.cont [6/16] 0.0, 128
  %190 = vxpose.xlu0.b32.cont [7/16] 0.0, 128
  %191 = vxpose.xlu0.b32.cont [8/16] 0.0, 128
  %192 = vxpose.xlu0.b32.cont [9/16] 0.0, 128
  %193 = vxpose.xlu0.b32.cont [10/16] 0.0, 128
  %194 = vxpose.xlu0.b32.cont [11/16] 0.0, 128
  %195 = vxpose.xlu0.b32.cont [12/16] 0.0, 128
  %196 = vxpose.xlu0.b32.cont [13/16] 0.0, 128
  %197 = vxpose.xlu0.b32.cont [14/16] 0.0, 128
  %198 = vxpose.xlu0.b32.cont [15/16] 0.0, 128
  %199 = vxpose.xlu0.b32.end [16/16] 0.0, 128
  %v200 = vpop.trf.xlu0
  %v201 = vpop.trf.xlu0
  %v202 = vpop.trf.xlu0
  %v203 = vpop.trf.xlu0
  %v204 = vpop.trf.xlu0
  %v205 = vpop.trf.xlu0
  %v206 = vpop.trf.xlu0
  %v207 = vpop.trf.xlu0
  %v208 = vpop.trf.xlu0
  %v209 = vpop.trf.xlu0
  %v210 = vpop.trf.xlu0
  %v211 = vpop.trf.xlu0
  %v212 = vpop.trf.xlu0
  %v213 = vpop.trf.xlu0
  %v214 = vpop.trf.xlu0
  %v215 = vpop.trf.xlu0
  %216 = vxpose.xlu0.b32.start [1/16] %v177, 128
  %217 = vxpose.xlu0.b32.cont [2/16] %v179, 128
  %218 = vxpose.xlu0.b32.cont [3/16] %v181, 128
  %219 = vxpose.xlu0.b32.cont [4/16] %v183, 128
  %220 = vxpose.xlu0.b32.cont [5/16] 0.0, 128
  %221 = vxpose.xlu0.b32.cont [6/16] 0.0, 128
  %222 = vxpose.xlu0.b32.cont [7/16] 0.0, 128
  %223 = vxpose.xlu0.b32.cont [8/16] 0.0, 128
  %224 = vxpose.xlu0.b32.cont [9/16] 0.0, 128
  %225 = vxpose.xlu0.b32.cont [10/16] 0.0, 128
  %226 = vxpose.xlu0.b32.cont [11/16] 0.0, 128
  %227 = vxpose.xlu0.b32.cont [12/16] 0.0, 128
  %228 = vxpose.xlu0.b32.cont [13/16] 0.0, 128
  %229 = vxpose.xlu0.b32.cont [14/16] 0.0, 128
  %230 = vxpose.xlu0.b32.cont [15/16] 0.0, 128
  %231 = vxpose.xlu0.b32.end [16/16] 0.0, 128
  %v232 = vpop.trf.xlu0
  %v233 = vpop.trf.xlu0
  %v234 = vpop.trf.xlu0
  %v235 = vpop.trf.xlu0
  %v236 = vpop.trf.xlu0
  %v237 = vpop.trf.xlu0
  %v238 = vpop.trf.xlu0
  %v239 = vpop.trf.xlu0
  %v240 = vpop.trf.xlu0
  %v241 = vpop.trf.xlu0
  %v242 = vpop.trf.xlu0
  %v243 = vpop.trf.xlu0
  %v244 = vpop.trf.xlu0
  %v245 = vpop.trf.xlu0
  %v246 = vpop.trf.xlu0
  %v247 = vpop.trf.xlu0
  %vm248 = vcmask 261120
  %249 = vst.msk [vmem:[%s3] sm:$0xff] %vm248, %v200
  %250 = vst.msk [vmem:[%s3 + $0x8] sm:$0xff] %vm248, %v201
  %251 = vst.msk [vmem:[%s3 + $0x10] sm:$0xff] %vm248, %v202
  %252 = vst.msk [vmem:[%s3 + $0x18] sm:$0xff] %vm248, %v203
  %253 = vst.msk [vmem:[%s3 + $0x20] sm:$0xff] %vm248, %v204
  %254 = vst.msk [vmem:[%s3 + $0x28] sm:$0xff] %vm248, %v205
  %255 = vst.msk [vmem:[%s3 + $0x30] sm:$0xff] %vm248, %v206
  %256 = vst.msk [vmem:[%s3 + $0x38] sm:$0xff] %vm248, %v207
  %257 = vst.msk [vmem:[%s3 + $0x40] sm:$0xff] %vm248, %v208
  %258 = vst.msk [vmem:[%s3 + $0x48] sm:$0xff] %vm248, %v209
  %259 = vst.msk [vmem:[%s3 + $0x50] sm:$0xff] %vm248, %v210
  %260 = vst.msk [vmem:[%s3 + $0x58] sm:$0xff] %vm248, %v211
  %261 = vst.msk [vmem:[%s3 + $0x60] sm:$0xff] %vm248, %v212
  %262 = vst.msk [vmem:[%s3 + $0x68] sm:$0xff] %vm248, %v213
  %263 = vst.msk [vmem:[%s3 + $0x70] sm:$0xff] %vm248, %v214
  %264 = vst.msk [vmem:[%s3 + $0x78] sm:$0xff] %vm248, %v215
  %265 = vst.msk [vmem:[%s3 + $0x80] sm:$0xff] %vm248, %v232
  %266 = vst.msk [vmem:[%s3 + $0x88] sm:$0xff] %vm248, %v233
  %267 = vst.msk [vmem:[%s3 + $0x90] sm:$0xff] %vm248, %v234
  %268 = vst.msk [vmem:[%s3 + $0x98] sm:$0xff] %vm248, %v235
  %269 = vst.msk [vmem:[%s3 + $0xa0] sm:$0xff] %vm248, %v236
  %270 = vst.msk [vmem:[%s3 + $0xa8] sm:$0xff] %vm248, %v237
  %271 = vst.msk [vmem:[%s3 + $0xb0] sm:$0xff] %vm248, %v238
  %272 = vst.msk [vmem:[%s3 + $0xb8] sm:$0xff] %vm248, %v239
  %273 = vst.msk [vmem:[%s3 + $0xc0] sm:$0xff] %vm248, %v240
  %274 = vst.msk [vmem:[%s3 + $0xc8] sm:$0xff] %vm248, %v241
  %275 = vst.msk [vmem:[%s3 + $0xd0] sm:$0xff] %vm248, %v242
  %276 = vst.msk [vmem:[%s3 + $0xd8] sm:$0xff] %vm248, %v243
  %277 = vst.msk [vmem:[%s3 + $0xe0] sm:$0xff] %vm248, %v244
  %278 = vst.msk [vmem:[%s3 + $0xe8] sm:$0xff] %vm248, %v245
  %279 = vst.msk [vmem:[%s3 + $0xf0] sm:$0xff] %vm248, %v246
  %280 = vst.msk [vmem:[%s3 + $0xf8] sm:$0xff] %vm248, %v247
  %v281 = vperm.slane %v22, 4
  %v282 = vperm.slane %v23, 4
  %v283 = vmul.f32 %v27, %v281
  %v284 = vmul.f32 %v27, %v282
  %v285 = vmul.f32 %v32, %v281
  %v286 = vmul.f32 %v32, %v282
  %v287 = vmul.f32 %v37, %v281
  %v288 = vmul.f32 %v37, %v282
  %v289 = vmul.f32 %v42, %v281
  %v290 = vmul.f32 %v42, %v282
  %v291 = vadd.f32 %v283, %v57
  %v292 = vadd.f32 %v284, %v57
  %v293 = vadd.f32 %v285, %v62
  %v294 = vadd.f32 %v286, %v62
  %v295 = vadd.f32 %v287, %v67
  %v296 = vadd.f32 %v288, %v67
  %v297 = vadd.f32 %v289, %v72
  %v298 = vadd.f32 %v290, %v72
  %v299 = vperm.slane %v22, 5
  %v300 = vperm.slane %v23, 5
  %v301 = vmul.f32 %v84, %v299
  %v302 = vmul.f32 %v84, %v300
  %v303 = vmul.f32 %v88, %v299
  %v304 = vmul.f32 %v88, %v300
  %v305 = vmul.f32 %v92, %v299
  %v306 = vmul.f32 %v92, %v300
  %v307 = vmul.f32 %v96, %v299
  %v308 = vmul.f32 %v96, %v300
  %v309 = vadd.f32 %v291, %v301
  %v310 = vadd.f32 %v292, %v302
  %v311 = vadd.f32 %v293, %v303
  %v312 = vadd.f32 %v294, %v304
  %v313 = vadd.f32 %v295, %v305
  %v314 = vadd.f32 %v296, %v306
  %v315 = vadd.f32 %v297, %v307
  %v316 = vadd.f32 %v298, %v308
  %v317 = vperm.slane %v22, 6
  %v318 = vperm.slane %v23, 6
  %v319 = vmul.f32 %v118, %v317
  %v320 = vmul.f32 %v118, %v318
  %v321 = vmul.f32 %v122, %v317
  %v322 = vmul.f32 %v122, %v318
  %v323 = vmul.f32 %v126, %v317
  %v324 = vmul.f32 %v126, %v318
  %v325 = vmul.f32 %v130, %v317
  %v326 = vmul.f32 %v130, %v318
  %v327 = vadd.f32 %v309, %v319
  %v328 = vadd.f32 %v310, %v320
  %v329 = vadd.f32 %v311, %v321
  %v330 = vadd.f32 %v312, %v322
  %v331 = vadd.f32 %v313, %v323
  %v332 = vadd.f32 %v314, %v324
  %v333 = vadd.f32 %v315, %v325
  %v334 = vadd.f32 %v316, %v326
  %v335 = vperm.slane %v22, 7
  %v336 = vperm.slane %v23, 7
  %v337 = vmul.f32 %v152, %v335
  %v338 = vmul.f32 %v152, %v336
  %v339 = vmul.f32 %v156, %v335
  %v340 = vmul.f32 %v156, %v336
  %v341 = vmul.f32 %v160, %v335
  %v342 = vmul.f32 %v160, %v336
  %v343 = vmul.f32 %v164, %v335
  %v344 = vmul.f32 %v164, %v336
  %v345 = vadd.f32 %v327, %v337
  %v346 = vadd.f32 %v328, %v338
  %v347 = vadd.f32 %v329, %v339
  %v348 = vadd.f32 %v330, %v340
  %v349 = vadd.f32 %v331, %v341
  %v350 = vadd.f32 %v332, %v342
  %v351 = vadd.f32 %v333, %v343
  %v352 = vadd.f32 %v334, %v344
  %353 = vxpose.xlu0.b32.start [1/16] %v345, 128
  %354 = vxpose.xlu0.b32.cont [2/16] %v347, 128
  %355 = vxpose.xlu0.b32.cont [3/16] %v349, 128
  %356 = vxpose.xlu0.b32.cont [4/16] %v351, 128
  %357 = vxpose.xlu0.b32.cont [5/16] 0.0, 128
  %358 = vxpose.xlu0.b32.cont [6/16] 0.0, 128
  %359 = vxpose.xlu0.b32.cont [7/16] 0.0, 128
  %360 = vxpose.xlu0.b32.cont [8/16] 0.0, 128
  %361 = vxpose.xlu0.b32.cont [9/16] 0.0, 128
  %362 = vxpose.xlu0.b32.cont [10/16] 0.0, 128
  %363 = vxpose.xlu0.b32.cont [11/16] 0.0, 128
  %364 = vxpose.xlu0.b32.cont [12/16] 0.0, 128
  %365 = vxpose.xlu0.b32.cont [13/16] 0.0, 128
  %366 = vxpose.xlu0.b32.cont [14/16] 0.0, 128
  %367 = vxpose.xlu0.b32.cont [15/16] 0.0, 128
  %368 = vxpose.xlu0.b32.end [16/16] 0.0, 128
  %v369 = vpop.trf.xlu0
  %v370 = vpop.trf.xlu0
  %v371 = vpop.trf.xlu0
  %v372 = vpop.trf.xlu0
  %v373 = vpop.trf.xlu0
  %v374 = vpop.trf.xlu0
  %v375 = vpop.trf.xlu0
  %v376 = vpop.trf.xlu0
  %v377 = vpop.trf.xlu0
  %v378 = vpop.trf.xlu0
  %v379 = vpop.trf.xlu0
  %v380 = vpop.trf.xlu0
  %v381 = vpop.trf.xlu0
  %v382 = vpop.trf.xlu0
  %v383 = vpop.trf.xlu0
  %v384 = vpop.trf.xlu0
  %385 = vxpose.xlu0.b32.start [1/16] %v346, 128
  %386 = vxpose.xlu0.b32.cont [2/16] %v348, 128
  %387 = vxpose.xlu0.b32.cont [3/16] %v350, 128
  %388 = vxpose.xlu0.b32.cont [4/16] %v352, 128
  %389 = vxpose.xlu0.b32.cont [5/16] 0.0, 128
  %390 = vxpose.xlu0.b32.cont [6/16] 0.0, 128
  %391 = vxpose.xlu0.b32.cont [7/16] 0.0, 128
  %392 = vxpose.xlu0.b32.cont [8/16] 0.0, 128
  %393 = vxpose.xlu0.b32.cont [9/16] 0.0, 128
  %394 = vxpose.xlu0.b32.cont [10/16] 0.0, 128
  %395 = vxpose.xlu0.b32.cont [11/16] 0.0, 128
  %396 = vxpose.xlu0.b32.cont [12/16] 0.0, 128
  %397 = vxpose.xlu0.b32.cont [13/16] 0.0, 128
  %398 = vxpose.xlu0.b32.cont [14/16] 0.0, 128
  %399 = vxpose.xlu0.b32.cont [15/16] 0.0, 128
  %400 = vxpose.xlu0.b32.end [16/16] 0.0, 128
  %v401 = vpop.trf.xlu0
  %v402 = vpop.trf.xlu0
  %v403 = vpop.trf.xlu0
  %v404 = vpop.trf.xlu0
  %v405 = vpop.trf.xlu0
  %v406 = vpop.trf.xlu0
  %v407 = vpop.trf.xlu0
  %v408 = vpop.trf.xlu0
  %v409 = vpop.trf.xlu0
  %v410 = vpop.trf.xlu0
  %v411 = vpop.trf.xlu0
  %v412 = vpop.trf.xlu0
  %v413 = vpop.trf.xlu0
  %v414 = vpop.trf.xlu0
  %v415 = vpop.trf.xlu0
  %v416 = vpop.trf.xlu0
  %s417 = scalar_lea.vmem %s3, 256
  %418 = vst.msk [vmem:[%s417] sm:$0xff] %vm248, %v369
  %419 = vst.msk [vmem:[%s417 + $0x8] sm:$0xff] %vm248, %v370
  %420 = vst.msk [vmem:[%s417 + $0x10] sm:$0xff] %vm248, %v371
  %421 = vst.msk [vmem:[%s417 + $0x18] sm:$0xff] %vm248, %v372
  %422 = vst.msk [vmem:[%s417 + $0x20] sm:$0xff] %vm248, %v373
  %423 = vst.msk [vmem:[%s417 + $0x28] sm:$0xff] %vm248, %v374
  %424 = vst.msk [vmem:[%s417 + $0x30] sm:$0xff] %vm248, %v375
  %425 = vst.msk [vmem:[%s417 + $0x38] sm:$0xff] %vm248, %v376
  %426 = vst.msk [vmem:[%s417 + $0x40] sm:$0xff] %vm248, %v377
  %427 = vst.msk [vmem:[%s417 + $0x48] sm:$0xff] %vm248, %v378
  %428 = vst.msk [vmem:[%s417 + $0x50] sm:$0xff] %vm248, %v379
  %429 = vst.msk [vmem:[%s417 + $0x58] sm:$0xff] %vm248, %v380
  %430 = vst.msk [vmem:[%s417 + $0x60] sm:$0xff] %vm248, %v381
  %431 = vst.msk [vmem:[%s417 + $0x68] sm:$0xff] %vm248, %v382
  %432 = vst.msk [vmem:[%s417 + $0x70] sm:$0xff] %vm248, %v383
  %433 = vst.msk [vmem:[%s417 + $0x78] sm:$0xff] %vm248, %v384
  %434 = vst.msk [vmem:[%s417 + $0x80] sm:$0xff] %vm248, %v401
  %435 = vst.msk [vmem:[%s417 + $0x88] sm:$0xff] %vm248, %v402
  %436 = vst.msk [vmem:[%s417 + $0x90] sm:$0xff] %vm248, %v403
  %437 = vst.msk [vmem:[%s417 + $0x98] sm:$0xff] %vm248, %v404
  %438 = vst.msk [vmem:[%s417 + $0xa0] sm:$0xff] %vm248, %v405
  %439 = vst.msk [vmem:[%s417 + $0xa8] sm:$0xff] %vm248, %v406
  %440 = vst.msk [vmem:[%s417 + $0xb0] sm:$0xff] %vm248, %v407
  %441 = vst.msk [vmem:[%s417 + $0xb8] sm:$0xff] %vm248, %v408
  %442 = vst.msk [vmem:[%s417 + $0xc0] sm:$0xff] %vm248, %v409
  %443 = vst.msk [vmem:[%s417 + $0xc8] sm:$0xff] %vm248, %v410
  %444 = vst.msk [vmem:[%s417 + $0xd0] sm:$0xff] %vm248, %v411
  %445 = vst.msk [vmem:[%s417 + $0xd8] sm:$0xff] %vm248, %v412
  %446 = vst.msk [vmem:[%s417 + $0xe0] sm:$0xff] %vm248, %v413
  %447 = vst.msk [vmem:[%s417 + $0xe8] sm:$0xff] %vm248, %v414
  %448 = vst.msk [vmem:[%s417 + $0xf0] sm:$0xff] %vm248, %v415
  %449 = vst.msk [vmem:[%s417 + $0xf8] sm:$0xff] %vm248, %v416
  // Predicated region
  $region14: #{tpu_custom_call.1} parent=0 // pred_check
    _
  $region15: #{tpu_custom_call.1} parent=0 // pred_check_branch
    %451 = sbr.rel (0) target = $region17
  $region16: #{tpu_custom_call.1} parent=0 // pred_region
    _
  $region17: #{tpu_custom_call.1} parent=0 // pred_fallthru
    _
  // Predicated region
  $region18: #{tpu_custom_call.1} parent=0 // pred_check
    _
  $region19: #{tpu_custom_call.1} parent=0 // pred_check_branch
    %453 = sbr.rel (0) target = $region21
  $region20: #{tpu_custom_call.1} parent=0 // pred_region
    _
  $region21: #{tpu_custom_call.1} parent=0 // pred_fallthru
    _

</llo_original>
